<compile_context>
chip_gen: v7x
topology: tpu7x:2x2x1
jax: 0.10.0
libtpu: 0.0.40
codegen_flags: <defaults>
</compile_context>

<pallas_src>
import functools

import jax
import jax.numpy as jnp
from jax import lax
from jax.experimental import pallas as pl
from jax.experimental.pallas import tpu as pltpu

LANE = 128      # vreg lane width / MXU granularity
SUBLANE = 8     # f32 sublane granularity


def _round_up(n, m):
    return (n + m - 1) // m * m


def mlp_kernel(x_ref, w_enc_ref, b_enc_ref, w_hid_ref, b_hid_ref,
               w_dec_ref, b_dec_ref, out_ref, *, num_layers, residual):
    # encoder: Linear + ReLU  (bf16 MXU inputs, f32 accumulation, f32 elementwise)
    h = jnp.dot(x_ref[...].astype(jnp.bfloat16), w_enc_ref[...],
                preferred_element_type=jnp.float32) + b_enc_ref[...]
    h = jnp.maximum(h, 0.0)

    # hidden stack: the PyTorch ModuleList alternates Linear and ReLU modules,
    # and (when residual=True) the forward adds a skip around EACH of them.
    def layer(i, h):
        lin = jnp.dot(h.astype(jnp.bfloat16), w_hid_ref[i],
                      preferred_element_type=jnp.float32) + b_hid_ref[i]
        h = lin + h if residual else lin
        r = jnp.maximum(h, 0.0)
        return r + h if residual else r

    if num_layers > 0:
        h = lax.fori_loop(0, num_layers, layer, h, unroll=(num_layers <= 4))

    # decoder: Linear + ReLU -> lane-dense (128-padded) output store
    o = jnp.dot(h.astype(jnp.bfloat16), w_dec_ref[...],
                preferred_element_type=jnp.float32) + b_dec_ref[...]
    out_ref[...] = jnp.maximum(o, 0.0).astype(out_ref.dtype)


@functools.partial(jax.jit, static_argnames=("residual", "tile_m"))
def mlp_forward(x, params, *, residual, tile_m=256):
    """Runs the Pallas MLP kernel. Accepts arbitrary (small) user-facing shapes;
    pads features to 128-lane multiples and batch to the tile size internally
    (zero padding is exact for this network), then slices the result back."""
    w_enc, b_enc, w_hid, b_hid, w_dec, b_dec = params
    batch, d_in = x.shape
    num_layers, hidden = w_hid.shape[0], w_hid.shape[2]
    d_out = w_dec.shape[1]

    d_in_p = _round_up(d_in, LANE)
    h_p = _round_up(hidden, LANE)
    d_out_p = _round_up(d_out, LANE)

    tm = min(tile_m, _round_up(batch, SUBLANE))
    batch_p = _round_up(batch, tm)

    # pad + cast: weights bf16 (MXU-native), biases/activations f32
    xp = jnp.pad(x.astype(jnp.float32),
                 ((0, batch_p - batch), (0, d_in_p - d_in)))
    w_enc_p = jnp.pad(w_enc, ((0, d_in_p - d_in), (0, h_p - hidden))).astype(jnp.bfloat16)
    b_enc_p = jnp.pad(b_enc, ((0, 0), (0, h_p - hidden))).astype(jnp.float32)
    w_hid_p = jnp.pad(w_hid, ((0, 0), (0, h_p - hidden), (0, h_p - hidden))).astype(jnp.bfloat16)
    b_hid_p = jnp.pad(b_hid, ((0, 0), (0, 0), (0, h_p - hidden))).astype(jnp.float32)
    w_dec_p = jnp.pad(w_dec, ((0, h_p - hidden), (0, d_out_p - d_out))).astype(jnp.bfloat16)
    b_dec_p = jnp.pad(b_dec, ((0, 0), (0, d_out_p - d_out))).astype(jnp.float32)

    grid = (batch_p // tm,)

    # explicit VMEM budget: resident bf16 weights + f32 biases
    #                       + double-buffered x/out tiles + activation headroom
    vmem_bytes = int(
        (w_enc_p.size + w_hid_p.size + w_dec_p.size) * 2
        + (b_enc_p.size + b_hid_p.size + b_dec_p.size) * 4
        + 2 * 2 * (tm * d_in_p * 4 + tm * d_out_p * 4)
        + 6 * tm * h_p * 4)
    vmem_limit = min(64 * 1024 * 1024,              # v7x physical ceiling
                     vmem_bytes + 16 * 1024 * 1024)  # generous headroom

    kernel = functools.partial(mlp_kernel, num_layers=num_layers, residual=residual)

    out_p = pl.pallas_call(
        kernel,
        out_shape=jax.ShapeDtypeStruct((batch_p, d_out_p), jnp.float32),
        grid_spec=pltpu.PrefetchScalarGridSpec(
            num_scalar_prefetch=0,
            grid=grid,
            in_specs=[
                pl.BlockSpec((tm, d_in_p), lambda i: (i, 0)),             # x tile (pipelined)
                pl.BlockSpec((d_in_p, h_p), lambda i: (0, 0)),            # encoder W (resident)
                pl.BlockSpec((1, h_p), lambda i: (0, 0)),                 # encoder b
                pl.BlockSpec((num_layers, h_p, h_p), lambda i: (0, 0, 0)),  # hidden W stack
                pl.BlockSpec((num_layers, 1, h_p), lambda i: (0, 0, 0)),    # hidden b stack
                pl.BlockSpec((h_p, d_out_p), lambda i: (0, 0)),           # decoder W
                pl.BlockSpec((1, d_out_p), lambda i: (0, 0)),             # decoder b
            ],
            out_specs=pl.BlockSpec((tm, d_out_p), lambda i: (i, 0)),      # lane-dense output
        ),
        compiler_params=pltpu.CompilerParams(
            dimension_semantics=("parallel",),
            vmem_limit_bytes=vmem_limit,
        ),
    )(xp, w_enc_p, b_enc_p, w_hid_p, b_hid_p, w_dec_p, b_dec_p)

    # TODO(synk): for very large hidden_dim/num_layers the (L,H,H) stack should be
    # streamed per-layer (grid axis over L or manual double-buffered DMA) instead of
    # held fully VMEM-resident; at realistic MLP sizes it fits comfortably.
    return out_p[:batch, :d_out]


def init_params(key, input_dim, hidden_dim, output_dim, num_layers):
    """Deterministic parameter init.

    Hidden layers use xavier-uniform weights + zero bias (cfg.model.init == 'xavier');
    encoder/decoder use a simple uniform fan-in init (stand-in for PyTorch default).
    Weights are stored as (in_features, out_features), i.e. already transposed.
    """
    k_enc, k_hid, k_dec = jax.random.split(key, 3)

    def uniform_fan_in(k, fan_in, shape):
        bound = 1.0 / jnp.sqrt(fan_in)
        return jax.random.uniform(k, shape, jnp.float32, -bound, bound)

    w_enc = uniform_fan_in(k_enc, input_dim, (input_dim, hidden_dim))
    b_enc = jnp.zeros((1, hidden_dim), jnp.float32)

    xav = jnp.sqrt(6.0 / (hidden_dim + hidden_dim))
    w_hid = jax.random.uniform(
        k_hid, (num_layers, hidden_dim, hidden_dim), jnp.float32, -xav, xav)
    b_hid = jnp.zeros((num_layers, 1, hidden_dim), jnp.float32)

    w_dec = uniform_fan_in(k_dec, hidden_dim, (hidden_dim, output_dim))
    b_dec = jnp.zeros((1, output_dim), jnp.float32)

    return (w_enc, b_enc, w_hid, b_hid, w_dec, b_dec)


def mlp_reference(x, params, *, residual):
    """Pure-JAX reference mirroring the PyTorch forward (same bf16 matmul path)."""
    w_enc, b_enc, w_hid, b_hid, w_dec, b_dec = params

    def mm(a, w):
        return jnp.dot(a.astype(jnp.bfloat16), w.astype(jnp.bfloat16),
                       preferred_element_type=jnp.float32)

    h = jnp.maximum(mm(x, w_enc) + b_enc, 0.0)
    for i in range(w_hid.shape[0]):
        lin = mm(h, w_hid[i]) + b_hid[i]
        h = lin + h if residual else lin
        r = jnp.maximum(h, 0.0)
        h = r + h if residual else r
    return jnp.maximum(mm(h, w_dec) + b_dec, 0.0)


if __name__ == "__main__":
    # cfg: hidden_dim=32, layers=2, residual (True/False), init='xavier'
    batch, input_dim, hidden_dim, output_dim, num_layers = 8, 16, 32, 8, 2

    key = jax.random.PRNGKey(0)
    k_x, k_p = jax.random.split(key)
    x = jax.random.normal(k_x, (batch, input_dim), jnp.float32)
    params = init_params(k_p, input_dim, hidden_dim, output_dim, num_layers)

    for residual in (True, False):
        out = mlp_forward(x, params, residual=residual)
        out = jax.block_until_ready(out)
        ref = mlp_reference(x, params, residual=residual)
        assert out.shape == (batch, output_dim)
        assert jnp.allclose(out, ref, atol=2e-2, rtol=2e-2), \
            f"mismatch vs reference (residual={residual})"

    print("KERNEL_OK")
</pallas_src>

<mosaic_0001>
module attributes {stable_mosaic.version = 11 : i64} {
  func.func @mlp_kernel(%arg0: i32, %arg1: memref<8x128xf32, #tpu.memory_space<vmem>>, %arg2: memref<128x128xbf16, #tpu.memory_space<vmem>>, %arg3: memref<1x128xf32, #tpu.memory_space<vmem>>, %arg4: memref<2x128x128xbf16, #tpu.memory_space<vmem>>, %arg5: memref<2x1x128xf32, #tpu.memory_space<vmem>>, %arg6: memref<128x128xbf16, #tpu.memory_space<vmem>>, %arg7: memref<1x128xf32, #tpu.memory_space<vmem>>, %arg8: memref<8x128xf32, #tpu.memory_space<vmem>>) attributes {dimension_semantics = [#tpu.dimension_semantics<parallel>], iteration_bounds = array<i64: 1>, scalar_prefetch = 0 : i64, scratch_operands = 0 : i64, tpu.core_type = #tpu.core_type<tc>, window_params = [{transform_indices = @transform_0, window_bounds = array<i64: 8, 128>}, {pipeline_mode = #tpu.pipeline_mode<synchronous>, transform_indices = @transform_1, window_bounds = array<i64: 128, 128>}, {pipeline_mode = #tpu.pipeline_mode<synchronous>, transform_indices = @transform_2, window_bounds = array<i64: 1, 128>}, {pipeline_mode = #tpu.pipeline_mode<synchronous>, transform_indices = @transform_3, window_bounds = array<i64: 2, 128, 128>}, {pipeline_mode = #tpu.pipeline_mode<synchronous>, transform_indices = @transform_4, window_bounds = array<i64: 2, 1, 128>}, {pipeline_mode = #tpu.pipeline_mode<synchronous>, transform_indices = @transform_5, window_bounds = array<i64: 128, 128>}, {pipeline_mode = #tpu.pipeline_mode<synchronous>, transform_indices = @transform_6, window_bounds = array<i64: 1, 128>}, {transform_indices = @transform_7, window_bounds = array<i64: 8, 128>}]} {
    %c0 = arith.constant 0 : index
    %c0_0 = arith.constant 0 : index
    %0 = vector.load %arg1[%c0, %c0_0] : memref<8x128xf32, #tpu.memory_space<vmem>>, vector<8x128xf32>
    %1 = arith.truncf %0 : vector<8x128xf32> to vector<8x128xbf16>
    %c0_1 = arith.constant 0 : index
    %c0_2 = arith.constant 0 : index
    %2 = vector.load %arg2[%c0_1, %c0_2] : memref<128x128xbf16, #tpu.memory_space<vmem>>, vector<128x128xbf16>
    %cst = arith.constant dense<0.000000e+00> : vector<8x128xf32>
    %3 = tpu.matmul %1, %2, %cst {dimension_numbers = #tpu.dot_dimension_numbers<[1], [0], [0], [1], [0, 0, 1, 1], [], []>} : vector<8x128xbf16>, vector<128x128xbf16>, vector<8x128xf32> -> vector<8x128xf32>
    %c0_3 = arith.constant 0 : index
    %c0_4 = arith.constant 0 : index
    %4 = vector.load %arg3[%c0_3, %c0_4] : memref<1x128xf32, #tpu.memory_space<vmem>>, vector<1x128xf32>
    %5 = vector.broadcast %4 : vector<1x128xf32> to vector<8x128xf32>
    %6 = arith.addf %3, %5 : vector<8x128xf32>
    %cst_5 = arith.constant 0.000000e+00 : f32
    %7 = vector.broadcast %cst_5 : f32 to vector<8x128xf32>
    %8 = arith.maximumf %6, %7 : vector<8x128xf32>
    %c0_i32 = arith.constant 0 : i32
    %9 = arith.truncf %8 : vector<8x128xf32> to vector<8x128xbf16>
    %10 = arith.index_cast %c0_i32 : i32 to index
    %c0_6 = arith.constant 0 : index
    %c0_7 = arith.constant 0 : index
    %11 = vector.load %arg4[%10, %c0_6, %c0_7] : memref<2x128x128xbf16, #tpu.memory_space<vmem>>, vector<1x128x128xbf16>
    %12 = vector.shape_cast %11 : vector<1x128x128xbf16> to vector<128x128xbf16>
    %cst_8 = arith.constant dense<0.000000e+00> : vector<8x128xf32>
    %13 = tpu.matmul %9, %12, %cst_8 {dimension_numbers = #tpu.dot_dimension_numbers<[1], [0], [0], [1], [0, 0, 1, 1], [], []>} : vector<8x128xbf16>, vector<128x128xbf16>, vector<8x128xf32> -> vector<8x128xf32>
    %14 = arith.index_cast %c0_i32 : i32 to index
    %c0_9 = arith.constant 0 : index
    %c0_10 = arith.constant 0 : index
    %15 = vector.load %arg5[%14, %c0_9, %c0_10] : memref<2x1x128xf32, #tpu.memory_space<vmem>>, vector<1x1x128xf32>
    %16 = vector.shape_cast %15 : vector<1x1x128xf32> to vector<1x128xf32>
    %17 = vector.broadcast %16 : vector<1x128xf32> to vector<8x128xf32>
    %18 = arith.addf %13, %17 : vector<8x128xf32>
    %19 = arith.addf %18, %8 : vector<8x128xf32>
    %cst_11 = arith.constant 0.000000e+00 : f32
    %20 = vector.broadcast %cst_11 : f32 to vector<8x128xf32>
    %21 = arith.maximumf %19, %20 : vector<8x128xf32>
    %22 = arith.addf %21, %19 : vector<8x128xf32>
    %c1_i32 = arith.constant 1 : i32
    %23 = arith.truncf %22 : vector<8x128xf32> to vector<8x128xbf16>
    %24 = arith.index_cast %c1_i32 : i32 to index
    %c0_12 = arith.constant 0 : index
    %c0_13 = arith.constant 0 : index
    %25 = vector.load %arg4[%24, %c0_12, %c0_13] : memref<2x128x128xbf16, #tpu.memory_space<vmem>>, vector<1x128x128xbf16>
    %26 = vector.shape_cast %25 : vector<1x128x128xbf16> to vector<128x128xbf16>
    %cst_14 = arith.constant dense<0.000000e+00> : vector<8x128xf32>
    %27 = tpu.matmul %23, %26, %cst_14 {dimension_numbers = #tpu.dot_dimension_numbers<[1], [0], [0], [1], [0, 0, 1, 1], [], []>} : vector<8x128xbf16>, vector<128x128xbf16>, vector<8x128xf32> -> vector<8x128xf32>
    %28 = arith.index_cast %c1_i32 : i32 to index
    %c0_15 = arith.constant 0 : index
    %c0_16 = arith.constant 0 : index
    %29 = vector.load %arg5[%28, %c0_15, %c0_16] : memref<2x1x128xf32, #tpu.memory_space<vmem>>, vector<1x1x128xf32>
    %30 = vector.shape_cast %29 : vector<1x1x128xf32> to vector<1x128xf32>
    %31 = vector.broadcast %30 : vector<1x128xf32> to vector<8x128xf32>
    %32 = arith.addf %27, %31 : vector<8x128xf32>
    %33 = arith.addf %32, %22 : vector<8x128xf32>
    %cst_17 = arith.constant 0.000000e+00 : f32
    %34 = vector.broadcast %cst_17 : f32 to vector<8x128xf32>
    %35 = arith.maximumf %33, %34 : vector<8x128xf32>
    %36 = arith.addf %35, %33 : vector<8x128xf32>
    %c2_i32 = arith.constant 2 : i32
    %37 = arith.truncf %36 : vector<8x128xf32> to vector<8x128xbf16>
    %c0_18 = arith.constant 0 : index
    %c0_19 = arith.constant 0 : index
    %38 = vector.load %arg6[%c0_18, %c0_19] : memref<128x128xbf16, #tpu.memory_space<vmem>>, vector<128x128xbf16>
    %cst_20 = arith.constant dense<0.000000e+00> : vector<8x128xf32>
    %39 = tpu.matmul %37, %38, %cst_20 {dimension_numbers = #tpu.dot_dimension_numbers<[1], [0], [0], [1], [0, 0, 1, 1], [], []>} : vector<8x128xbf16>, vector<128x128xbf16>, vector<8x128xf32> -> vector<8x128xf32>
    %c0_21 = arith.constant 0 : index
    %c0_22 = arith.constant 0 : index
    %40 = vector.load %arg7[%c0_21, %c0_22] : memref<1x128xf32, #tpu.memory_space<vmem>>, vector<1x128xf32>
    %41 = vector.broadcast %40 : vector<1x128xf32> to vector<8x128xf32>
    %42 = arith.addf %39, %41 : vector<8x128xf32>
    %cst_23 = arith.constant 0.000000e+00 : f32
    %43 = vector.broadcast %cst_23 : f32 to vector<8x128xf32>
    %44 = arith.maximumf %42, %43 : vector<8x128xf32>
    %c0_24 = arith.constant 0 : index
    %c0_25 = arith.constant 0 : index
    %45 = vector.load %arg8[%c0_24, %c0_25] : memref<8x128xf32, #tpu.memory_space<vmem>>, vector<8x128xf32>
    tpu.vector_store %arg8[%c0_24, %c0_25], %44 {strides = array<i32>} : memref<8x128xf32, #tpu.memory_space<vmem>>, vector<8x128xf32>,
    return
  }
  func.func @transform_0(%arg0: i32) -> (i32, i32) {
    %c0_i32 = arith.constant 0 : i32
    %c0_i32_0 = arith.constant 0 : i32
    return %arg0, %c0_i32 : i32, i32
  }
  func.func @transform_1(%arg0: i32) -> (i32, i32) {
    %c0_i32 = arith.constant 0 : i32
    %c0_i32_0 = arith.constant 0 : i32
    %c0_i32_1 = arith.constant 0 : i32
    return %c0_i32, %c0_i32_0 : i32, i32
  }
  func.func @transform_2(%arg0: i32) -> (i32, i32) {
    %c0_i32 = arith.constant 0 : i32
    %c0_i32_0 = arith.constant 0 : i32
    %c0_i32_1 = arith.constant 0 : i32
    return %c0_i32, %c0_i32_0 : i32, i32
  }
  func.func @transform_3(%arg0: i32) -> (i32, i32, i32) {
    %c0_i32 = arith.constant 0 : i32
    %c0_i32_0 = arith.constant 0 : i32
    %c0_i32_1 = arith.constant 0 : i32
    %c0_i32_2 = arith.constant 0 : i32
    return %c0_i32, %c0_i32_0, %c0_i32_1 : i32, i32, i32
  }
  func.func @transform_4(%arg0: i32) -> (i32, i32, i32) {
    %c0_i32 = arith.constant 0 : i32
    %c0_i32_0 = arith.constant 0 : i32
    %c0_i32_1 = arith.constant 0 : i32
    %c0_i32_2 = arith.constant 0 : i32
    return %c0_i32, %c0_i32_0, %c0_i32_1 : i32, i32, i32
  }
  func.func @transform_5(%arg0: i32) -> (i32, i32) {
    %c0_i32 = arith.constant 0 : i32
    %c0_i32_0 = arith.constant 0 : i32
    %c0_i32_1 = arith.constant 0 : i32
    return %c0_i32, %c0_i32_0 : i32, i32
  }
  func.func @transform_6(%arg0: i32) -> (i32, i32) {
    %c0_i32 = arith.constant 0 : i32
    %c0_i32_0 = arith.constant 0 : i32
    %c0_i32_1 = arith.constant 0 : i32
    return %c0_i32, %c0_i32_0 : i32, i32
  }
  func.func @transform_7(%arg0: i32) -> (i32, i32) {
    %c0_i32 = arith.constant 0 : i32
    %c0_i32_0 = arith.constant 0 : i32
    return %arg0, %c0_i32 : i32, i32
  }
}

</mosaic_0001>

<llo_original>
// kernel: mlp_forward.1
$region0: #{mlp_forward.1}
  #allocation0 [shape = 'u32[]', space=smem, size = 0x4, offset = 0x4, fixed_abs, tag = 'smem constant byte address 0x4 - core index']
  #allocation1 [shape = 'u32[144,128]{1,0:T(1,128)}', space=vmem, size = 0x12000, scoped, tag = 'internal scratch']
  %s0 = inlined_call_operand.vmem [shape: f32[8,128], index: 0, kind: input, shape index: {}]
  %s1 = inlined_call_operand.vmem [shape: bf16[128,128], index: 1, kind: input, shape index: {}]
  %s2 = inlined_call_operand.vmem [shape: f32[1,128], index: 2, kind: input, shape index: {}]
  %s3 = inlined_call_operand.vmem [shape: bf16[2,128,128], index: 3, kind: input, shape index: {}]
  %s4 = inlined_call_operand.vmem [shape: f32[2,1,128], index: 4, kind: input, shape index: {}]
  %s5 = inlined_call_operand.vmem [shape: bf16[128,128], index: 5, kind: input, shape index: {}]
  %s6 = inlined_call_operand.vmem [shape: f32[1,128], index: 6, kind: input, shape index: {}]
  %s7 = inlined_call_operand.hbm [shape: f32[8,128], index: 7, kind: output, shape index: {}]
  %s8 = sld [smem:[#allocation0]]
  $region38: #{mlp_forward.1} parent=0
    _
  %s10 = ssub.s32 1, %s8
  %s11 = scalar_select 0, %s10, %s8
  $region1: #{mlp_forward.1} parent=0
    #allocation2 [shape = 'u8[4096]{0}', space=vmem, size = 0x1000, scoped, tag = 'output window, operand 0, single buffered']
    #allocation3 [shape = 's32[1]{0}', space=sflag, size = 0x4, scoped, tag = 'scoped memory for mlp_forward.1']
    %12 = vsyncpa [#allocation3], 0
    // Predicated region
    $region2: #{mlp_forward.1} parent=1 // pred_check
      _
    $region3: #{mlp_forward.1} parent=1 // pred_check_branch
      %14 = sbr.rel (0) target = $region5
    $region4: #{mlp_forward.1} parent=1 // pred_region
      _
    $region5: #{mlp_forward.1} parent=1 // pred_fallthru
      _
    // Predicated region
    $region6: #{mlp_forward.1} parent=1 // pred_check
      _
    $region7: #{mlp_forward.1} parent=1 // pred_check_branch
      %16 = sbr.rel (0) target = $region9
    $region8: #{mlp_forward.1} parent=1 // pred_region
      _
    $region9: #{mlp_forward.1} parent=1 // pred_fallthru
      _
    // Predicated region
    $region10: #{mlp_forward.1} parent=1 // pred_check
      _
    $region11: #{mlp_forward.1} parent=1 // pred_check_branch
      %18 = sbr.rel (0) target = $region13
    $region12: #{mlp_forward.1} parent=1 // pred_region
      _
    $region13: #{mlp_forward.1} parent=1 // pred_fallthru
      _
    // Predicated region
    $region14: #{mlp_forward.1} parent=1 // pred_check
      _
    $region15: #{mlp_forward.1} parent=1 // pred_check_branch
      %20 = sbr.rel (0) target = $region17
    $region16: #{mlp_forward.1} parent=1 // pred_region
      _
    $region17: #{mlp_forward.1} parent=1 // pred_fallthru
      _
    // Predicated region
    $region18: #{mlp_forward.1} parent=1 // pred_check
      _
    $region19: #{mlp_forward.1} parent=1 // pred_check_branch
      %22 = sbr.rel (0) target = $region21
    $region20: #{mlp_forward.1} parent=1 // pred_region
      _
    $region21: #{mlp_forward.1} parent=1 // pred_fallthru
      _
    // Predicated region
    $region22: #{mlp_forward.1} parent=1 // pred_check
      _
    $region23: #{mlp_forward.1} parent=1 // pred_check_branch
      %24 = sbr.rel (0) target = $region25
    $region24: #{mlp_forward.1} parent=1 // pred_region
      _
    $region25: #{mlp_forward.1} parent=1 // pred_fallthru
      _
    // Predicated region
    $region26: #{mlp_forward.1} parent=1 // pred_check
      _
    $region27: #{mlp_forward.1} parent=1 // pred_check_branch
      %26 = sbr.rel (0) target = $region29
    $region28: #{mlp_forward.1} parent=1 // pred_region
      _
    $region29: #{mlp_forward.1} parent=1 // pred_fallthru
      _
    %v28 = vld [vmem:[%s0] sm:$0xff]
    %v29 = vpack.c.bf16 %v28, %v28
    %v30 = vld [vmem:[%s1] sm:$0xf]
    %v31 = vld [vmem:[%s1 + $0x4] sm:$0xf]
    %v32 = vld [vmem:[%s1 + $0x8] sm:$0xf]
    %v33 = vld [vmem:[%s1 + $0xc] sm:$0xf]
    %v34 = vld [vmem:[%s1 + $0x10] sm:$0xf]
    %v35 = vld [vmem:[%s1 + $0x14] sm:$0xf]
    %v36 = vld [vmem:[%s1 + $0x18] sm:$0xf]
    %v37 = vld [vmem:[%s1 + $0x1c] sm:$0xf]
    %v38 = vld [vmem:[%s1 + $0x20] sm:$0xf]
    %v39 = vld [vmem:[%s1 + $0x24] sm:$0xf]
    %v40 = vld [vmem:[%s1 + $0x28] sm:$0xf]
    %v41 = vld [vmem:[%s1 + $0x2c] sm:$0xf]
    %v42 = vld [vmem:[%s1 + $0x30] sm:$0xf]
    %v43 = vld [vmem:[%s1 + $0x34] sm:$0xf]
    %v44 = vld [vmem:[%s1 + $0x38] sm:$0xf]
    %v45 = vld [vmem:[%s1 + $0x3c] sm:$0xf]
    %v46 = vld [vmem:[%s2] sm:$0x1]
    %v48 = vlaneseq
    %v49 = vshrl.u32 %v48, 7
    %v50 = vsub.s32 0, %v49
    %v51 = vrot.slane %v46, %v50
    %v69 = vunpack.c.l.b16 %v30
    %v70 = vunpack.c.l.b16 %v31
    %v71 = vunpack.c.l.b16 %v32
    %v72 = vunpack.c.l.b16 %v33
    %v73 = vunpack.c.l.b16 %v34
    %v74 = vunpack.c.l.b16 %v35
    %v75 = vunpack.c.l.b16 %v36
    %v76 = vunpack.c.l.b16 %v37
    %v77 = vunpack.c.l.b16 %v38
    %v78 = vunpack.c.l.b16 %v39
    %v79 = vunpack.c.l.b16 %v40
    %v80 = vunpack.c.l.b16 %v41
    %v81 = vunpack.c.l.b16 %v42
    %v82 = vunpack.c.l.b16 %v43
    %v83 = vunpack.c.l.b16 %v44
    %v84 = vunpack.c.l.b16 %v45
    %v85 = vpack.c.b16 %v70, %v69
    %v86 = vpack.c.b16 %v72, %v71
    %v87 = vpack.c.b16 %v74, %v73
    %v88 = vpack.c.b16 %v76, %v75
    %v89 = vpack.c.b16 %v78, %v77
    %v90 = vpack.c.b16 %v80, %v79
    %v91 = vpack.c.b16 %v82, %v81
    %v92 = vpack.c.b16 %v84, %v83
    %101 = vmatprep.subr.bf16.mxu0 0
    %102 = vmatpush1.bf16.msra.mxu0 %v85
    %103 = vmatprep.subr.bf16.mxu0 0
    %104 = vmatpush1.bf16.msra.mxu0 %v86
    %105 = vmatprep.subr.bf16.mxu0 0
    %106 = vmatpush1.bf16.msra.mxu0 %v87
    %107 = vmatprep.subr.bf16.mxu0 0
    %108 = vmatpush1.bf16.msra.mxu0 %v88
    %109 = vmatprep.subr.bf16.mxu0 0
    %110 = vmatpush1.bf16.msra.mxu0 %v89
    %111 = vmatprep.subr.bf16.mxu0 0
    %112 = vmatpush1.bf16.msra.mxu0 %v90
    %113 = vmatprep.subr.bf16.mxu0 0
    %114 = vmatpush1.bf16.msra.mxu0 %v91
    %115 = vmatprep.subr.bf16.mxu0 0
    %116 = vmatpush1.bf16.msra.mxu0 %v92
    %117 = vmatprep.subr.bf16.mxu0 0
    %118 = vmatpush1.bf16.msra.mxu0 0
    %119 = vmatprep.subr.bf16.mxu0 0
    %120 = vmatpush1.bf16.msra.mxu0 0
    %121 = vmatprep.subr.bf16.mxu0 0
    %122 = vmatpush1.bf16.msra.mxu0 0
    %123 = vmatprep.subr.bf16.mxu0 0
    %124 = vmatpush1.bf16.msra.mxu0 0
    %125 = vmatprep.subr.bf16.mxu0 0
    %126 = vmatpush1.bf16.msra.mxu0 0
    %127 = vmatprep.subr.bf16.mxu0 0
    %128 = vmatpush1.bf16.msra.mxu0 0
    %129 = vmatprep.subr.bf16.mxu0 0
    %130 = vmatpush1.bf16.msra.mxu0 0
    %131 = vmatprep.subr.bf16.mxu0 0
    %132 = vmatpush1.bf16.msra.mxu0 0
    %133 = vmatprep.mubr.bf16.mxu0 0
    %134 = vmatmul.mubr.bf16.gmra.mrb[0].mxu0 %v29
    %v135 = vpop.f32.mrb[0].mxu0
    %v136 = vadd.f32 %v51, %v135
    %v137 = vpop.f32.mrb[0].mxu0
    %v138 = vpop.f32.mrb[0].mxu0
    %v139 = vpop.f32.mrb[0].mxu0
    %140 = vdwg.mxu0
    %v141 = vmax.f32 %v136, 0.0
    %v142 = vpack.c.bf16 %v141, %v141
    %v143 = vld [vmem:[%s3] sm:$0xf]
    %v144 = vld [vmem:[%s3 + $0x4] sm:$0xf]
    %v145 = vld [vmem:[%s3 + $0x8] sm:$0xf]
    %v146 = vld [vmem:[%s3 + $0xc] sm:$0xf]
    %v147 = vld [vmem:[%s3 + $0x10] sm:$0xf]
    %v148 = vld [vmem:[%s3 + $0x14] sm:$0xf]
    %v149 = vld [vmem:[%s3 + $0x18] sm:$0xf]
    %v150 = vld [vmem:[%s3 + $0x1c] sm:$0xf]
    %v151 = vld [vmem:[%s3 + $0x20] sm:$0xf]
    %v152 = vld [vmem:[%s3 + $0x24] sm:$0xf]
    %v153 = vld [vmem:[%s3 + $0x28] sm:$0xf]
    %v154 = vld [vmem:[%s3 + $0x2c] sm:$0xf]
    %v155 = vld [vmem:[%s3 + $0x30] sm:$0xf]
    %v156 = vld [vmem:[%s3 + $0x34] sm:$0xf]
    %v157 = vld [vmem:[%s3 + $0x38] sm:$0xf]
    %v158 = vld [vmem:[%s3 + $0x3c] sm:$0xf]
    %v159 = vld [vmem:[%s4] sm:$0x1]
    %v161 = vlaneseq
    %v162 = vshrl.u32 %v161, 7
    %v163 = vsub.s32 0, %v162
    %v164 = vrot.slane %v159, %v163
    %v182 = vunpack.c.l.b16 %v143
    %v183 = vunpack.c.l.b16 %v144
    %v184 = vunpack.c.l.b16 %v145
    %v185 = vunpack.c.l.b16 %v146
    %v186 = vunpack.c.l.b16 %v147
    %v187 = vunpack.c.l.b16 %v148
    %v188 = vunpack.c.l.b16 %v149
    %v189 = vunpack.c.l.b16 %v150
    %v190 = vunpack.c.l.b16 %v151
    %v191 = vunpack.c.l.b16 %v152
    %v192 = vunpack.c.l.b16 %v153
    %v193 = vunpack.c.l.b16 %v154
    %v194 = vunpack.c.l.b16 %v155
    %v195 = vunpack.c.l.b16 %v156
    %v196 = vunpack.c.l.b16 %v157
    %v197 = vunpack.c.l.b16 %v158
    %v198 = vpack.c.b16 %v183, %v182
    %v199 = vpack.c.b16 %v185, %v184
    %v200 = vpack.c.b16 %v187, %v186
    %v201 = vpack.c.b16 %v189, %v188
    %v202 = vpack.c.b16 %v191, %v190
    %v203 = vpack.c.b16 %v193, %v192
    %v204 = vpack.c.b16 %v195, %v194
    %v205 = vpack.c.b16 %v197, %v196
    %214 = vmatprep.subr.bf16.mxu0 0
    %215 = vmatpush1.bf16.msra.mxu0 %v198
    %216 = vmatprep.subr.bf16.mxu0 0
    %217 = vmatpush1.bf16.msra.mxu0 %v199
    %218 = vmatprep.subr.bf16.mxu0 0
    %219 = vmatpush1.bf16.msra.mxu0 %v200
    %220 = vmatprep.subr.bf16.mxu0 0
    %221 = vmatpush1.bf16.msra.mxu0 %v201
    %222 = vmatprep.subr.bf16.mxu0 0
    %223 = vmatpush1.bf16.msra.mxu0 %v202
    %224 = vmatprep.subr.bf16.mxu0 0
    %225 = vmatpush1.bf16.msra.mxu0 %v203
    %226 = vmatprep.subr.bf16.mxu0 0
    %227 = vmatpush1.bf16.msra.mxu0 %v204
    %228 = vmatprep.subr.bf16.mxu0 0
    %229 = vmatpush1.bf16.msra.mxu0 %v205
    %230 = vmatprep.subr.bf16.mxu0 0
    %231 = vmatpush1.bf16.msra.mxu0 0
    %232 = vmatprep.subr.bf16.mxu0 0
    %233 = vmatpush1.bf16.msra.mxu0 0
    %234 = vmatprep.subr.bf16.mxu0 0
    %235 = vmatpush1.bf16.msra.mxu0 0
    %236 = vmatprep.subr.bf16.mxu0 0
    %237 = vmatpush1.bf16.msra.mxu0 0
    %238 = vmatprep.subr.bf16.mxu0 0
    %239 = vmatpush1.bf16.msra.mxu0 0
    %240 = vmatprep.subr.bf16.mxu0 0
    %241 = vmatpush1.bf16.msra.mxu0 0
    %242 = vmatprep.subr.bf16.mxu0 0
    %243 = vmatpush1.bf16.msra.mxu0 0
    %244 = vmatprep.subr.bf16.mxu0 0
    %245 = vmatpush1.bf16.msra.mxu0 0
    %246 = vmatprep.mubr.bf16.mxu0 0
    %247 = vmatmul.mubr.bf16.gmra.mrb[0].mxu0 %v142
    %v248 = vpop.f32.mrb[0].mxu0
    %v249 = vadd.f32 %v164, %v248
    %v250 = vpop.f32.mrb[0].mxu0
    %v251 = vpop.f32.mrb[0].mxu0
    %v252 = vpop.f32.mrb[0].mxu0
    %253 = vdwg.mxu0
    %v254 = vadd.f32 %v249, %v141
    %v255 = vmax.f32 %v254, 0.0
    %v256 = vadd.f32 %v255, %v254
    %v257 = vpack.c.bf16 %v256, %v256
    %s258 = scalar_lea.vmem %s3, 64
    %v259 = vld [vmem:[%s258] sm:$0xf]
    %v260 = vld [vmem:[%s258 + $0x4] sm:$0xf]
    %v261 = vld [vmem:[%s258 + $0x8] sm:$0xf]
    %v262 = vld [vmem:[%s258 + $0xc] sm:$0xf]
    %v263 = vld [vmem:[%s258 + $0x10] sm:$0xf]
    %v264 = vld [vmem:[%s258 + $0x14] sm:$0xf]
    %v265 = vld [vmem:[%s258 + $0x18] sm:$0xf]
    %v266 = vld [vmem:[%s258 + $0x1c] sm:$0xf]
    %v267 = vld [vmem:[%s258 + $0x20] sm:$0xf]
    %v268 = vld [vmem:[%s258 + $0x24] sm:$0xf]
    %v269 = vld [vmem:[%s258 + $0x28] sm:$0xf]
    %v270 = vld [vmem:[%s258 + $0x2c] sm:$0xf]
    %v271 = vld [vmem:[%s258 + $0x30] sm:$0xf]
    %v272 = vld [vmem:[%s258 + $0x34] sm:$0xf]
    %v273 = vld [vmem:[%s258 + $0x38] sm:$0xf]
    %v274 = vld [vmem:[%s258 + $0x3c] sm:$0xf]
    %s275 = scalar_lea.vmem %s4, 1
    %v276 = vld [vmem:[%s275] sm:$0x1]
    %v278 = vlaneseq
    %v279 = vshrl.u32 %v278, 7
    %v280 = vsub.s32 0, %v279
    %v281 = vrot.slane %v276, %v280
    %v299 = vunpack.c.l.b16 %v259
    %v300 = vunpack.c.l.b16 %v260
    %v301 = vunpack.c.l.b16 %v261
    %v302 = vunpack.c.l.b16 %v262
    %v303 = vunpack.c.l.b16 %v263
    %v304 = vunpack.c.l.b16 %v264
    %v305 = vunpack.c.l.b16 %v265
    %v306 = vunpack.c.l.b16 %v266
    %v307 = vunpack.c.l.b16 %v267
    %v308 = vunpack.c.l.b16 %v268
    %v309 = vunpack.c.l.b16 %v269
    %v310 = vunpack.c.l.b16 %v270
    %v311 = vunpack.c.l.b16 %v271
    %v312 = vunpack.c.l.b16 %v272
    %v313 = vunpack.c.l.b16 %v273
    %v314 = vunpack.c.l.b16 %v274
    %v315 = vpack.c.b16 %v300, %v299
    %v316 = vpack.c.b16 %v302, %v301
    %v317 = vpack.c.b16 %v304, %v303
    %v318 = vpack.c.b16 %v306, %v305
    %v319 = vpack.c.b16 %v308, %v307
    %v320 = vpack.c.b16 %v310, %v309
    %v321 = vpack.c.b16 %v312, %v311
    %v322 = vpack.c.b16 %v314, %v313
    %331 = vmatprep.subr.bf16.mxu0 0
    %332 = vmatpush1.bf16.msra.mxu0 %v315
    %333 = vmatprep.subr.bf16.mxu0 0
    %334 = vmatpush1.bf16.msra.mxu0 %v316
    %335 = vmatprep.subr.bf16.mxu0 0
    %336 = vmatpush1.bf16.msra.mxu0 %v317
    %337 = vmatprep.subr.bf16.mxu0 0
    %338 = vmatpush1.bf16.msra.mxu0 %v318
    %339 = vmatprep.subr.bf16.mxu0 0
    %340 = vmatpush1.bf16.msra.mxu0 %v319
    %341 = vmatprep.subr.bf16.mxu0 0
    %342 = vmatpush1.bf16.msra.mxu0 %v320
    %343 = vmatprep.subr.bf16.mxu0 0
    %344 = vmatpush1.bf16.msra.mxu0 %v321
    %345 = vmatprep.subr.bf16.mxu0 0
    %346 = vmatpush1.bf16.msra.mxu0 %v322
    %347 = vmatprep.subr.bf16.mxu0 0
    %348 = vmatpush1.bf16.msra.mxu0 0
    %349 = vmatprep.subr.bf16.mxu0 0
    %350 = vmatpush1.bf16.msra.mxu0 0
    %351 = vmatprep.subr.bf16.mxu0 0
    %352 = vmatpush1.bf16.msra.mxu0 0
    %353 = vmatprep.subr.bf16.mxu0 0
    %354 = vmatpush1.bf16.msra.mxu0 0
    %355 = vmatprep.subr.bf16.mxu0 0
    %356 = vmatpush1.bf16.msra.mxu0 0
    %357 = vmatprep.subr.bf16.mxu0 0
    %358 = vmatpush1.bf16.msra.mxu0 0
    %359 = vmatprep.subr.bf16.mxu0 0
    %360 = vmatpush1.bf16.msra.mxu0 0
    %361 = vmatprep.subr.bf16.mxu0 0
    %362 = vmatpush1.bf16.msra.mxu0 0
    %363 = vmatprep.mubr.bf16.mxu0 0
    %364 = vmatmul.mubr.bf16.gmra.mrb[0].mxu0 %v257
    %v365 = vpop.f32.mrb[0].mxu0
    %v366 = vadd.f32 %v281, %v365
    %v367 = vpop.f32.mrb[0].mxu0
    %v368 = vpop.f32.mrb[0].mxu0
    %v369 = vpop.f32.mrb[0].mxu0
    %370 = vdwg.mxu0
    %v371 = vadd.f32 %v366, %v256
    %v372 = vmax.f32 %v371, 0.0
    %v373 = vadd.f32 %v372, %v371
    %v374 = vpack.c.bf16 %v373, %v373
    %v375 = vld [vmem:[%s5] sm:$0xf]
    %v376 = vld [vmem:[%s5 + $0x4] sm:$0xf]
    %v377 = vld [vmem:[%s5 + $0x8] sm:$0xf]
    %v378 = vld [vmem:[%s5 + $0xc] sm:$0xf]
    %v379 = vld [vmem:[%s5 + $0x10] sm:$0xf]
    %v380 = vld [vmem:[%s5 + $0x14] sm:$0xf]
    %v381 = vld [vmem:[%s5 + $0x18] sm:$0xf]
    %v382 = vld [vmem:[%s5 + $0x1c] sm:$0xf]
    %v383 = vld [vmem:[%s5 + $0x20] sm:$0xf]
    %v384 = vld [vmem:[%s5 + $0x24] sm:$0xf]
    %v385 = vld [vmem:[%s5 + $0x28] sm:$0xf]
    %v386 = vld [vmem:[%s5 + $0x2c] sm:$0xf]
    %v387 = vld [vmem:[%s5 + $0x30] sm:$0xf]
    %v388 = vld [vmem:[%s5 + $0x34] sm:$0xf]
    %v389 = vld [vmem:[%s5 + $0x38] sm:$0xf]
    %v390 = vld [vmem:[%s5 + $0x3c] sm:$0xf]
    %v391 = vld [vmem:[%s6] sm:$0x1]
    %v393 = vlaneseq
    %v394 = vshrl.u32 %v393, 7
    %v395 = vsub.s32 0, %v394
    %v396 = vrot.slane %v391, %v395
    %v414 = vunpack.c.l.b16 %v375
    %v415 = vunpack.c.l.b16 %v376
    %v416 = vunpack.c.l.b16 %v377
    %v417 = vunpack.c.l.b16 %v378
    %v418 = vunpack.c.l.b16 %v379
    %v419 = vunpack.c.l.b16 %v380
    %v420 = vunpack.c.l.b16 %v381
    %v421 = vunpack.c.l.b16 %v382
    %v422 = vunpack.c.l.b16 %v383
    %v423 = vunpack.c.l.b16 %v384
    %v424 = vunpack.c.l.b16 %v385
    %v425 = vunpack.c.l.b16 %v386
    %v426 = vunpack.c.l.b16 %v387
    %v427 = vunpack.c.l.b16 %v388
    %v428 = vunpack.c.l.b16 %v389
    %v429 = vunpack.c.l.b16 %v390
    %v430 = vpack.c.b16 %v415, %v414
    %v431 = vpack.c.b16 %v417, %v416
    %v432 = vpack.c.b16 %v419, %v418
    %v433 = vpack.c.b16 %v421, %v420
    %v434 = vpack.c.b16 %v423, %v422
    %v435 = vpack.c.b16 %v425, %v424
    %v436 = vpack.c.b16 %v427, %v426
    %v437 = vpack.c.b16 %v429, %v428
    %446 = vmatprep.subr.bf16.mxu0 0
    %447 = vmatpush1.bf16.msra.mxu0 %v430
    %448 = vmatprep.subr.bf16.mxu0 0
    %449 = vmatpush1.bf16.msra.mxu0 %v431
    %450 = vmatprep.subr.bf16.mxu0 0
    %451 = vmatpush1.bf16.msra.mxu0 %v432
    %452 = vmatprep.subr.bf16.mxu0 0
    %453 = vmatpush1.bf16.msra.mxu0 %v433
    %454 = vmatprep.subr.bf16.mxu0 0
    %455 = vmatpush1.bf16.msra.mxu0 %v434
    %456 = vmatprep.subr.bf16.mxu0 0
    %457 = vmatpush1.bf16.msra.mxu0 %v435
    %458 = vmatprep.subr.bf16.mxu0 0
    %459 = vmatpush1.bf16.msra.mxu0 %v436
    %460 = vmatprep.subr.bf16.mxu0 0
    %461 = vmatpush1.bf16.msra.mxu0 %v437
    %462 = vmatprep.subr.bf16.mxu0 0
    %463 = vmatpush1.bf16.msra.mxu0 0
    %464 = vmatprep.subr.bf16.mxu0 0
    %465 = vmatpush1.bf16.msra.mxu0 0
    %466 = vmatprep.subr.bf16.mxu0 0
    %467 = vmatpush1.bf16.msra.mxu0 0
    %468 = vmatprep.subr.bf16.mxu0 0
    %469 = vmatpush1.bf16.msra.mxu0 0
    %470 = vmatprep.subr.bf16.mxu0 0
    %471 = vmatpush1.bf16.msra.mxu0 0
    %472 = vmatprep.subr.bf16.mxu0 0
    %473 = vmatpush1.bf16.msra.mxu0 0
    %474 = vmatprep.subr.bf16.mxu0 0
    %475 = vmatpush1.bf16.msra.mxu0 0
    %476 = vmatprep.subr.bf16.mxu0 0
    %477 = vmatpush1.bf16.msra.mxu0 0
    %478 = vmatprep.mubr.bf16.mxu0 0
    %479 = vmatmul.mubr.bf16.gmra.mrb[0].mxu0 %v374
    %v480 = vpop.f32.mrb[0].mxu0
    %v481 = vadd.f32 %v396, %v480
    %v482 = vpop.f32.mrb[0].mxu0
    %v483 = vpop.f32.mrb[0].mxu0
    %v484 = vpop.f32.mrb[0].mxu0
    %485 = vdwg.mxu0
    %v486 = vmax.f32 %v481, 0.0
    %487 = vst [vmem:[#allocation2] sm:$0xff] %v486
    // Predicated region
    $region30: #{mlp_forward.1} parent=1 // pred_check
      _
    $region31: #{mlp_forward.1} parent=1 // pred_check_branch
      %489 = sbr.rel (0) target = $region33
    $region32: #{mlp_forward.1} parent=1 // pred_region
      %s491 = ssub.s32 128, 128
      %492 = vsyncadd [#allocation3], %s491
      %s494 = sshll.u32 [#allocation2], 4
      %s495 = int_to_ptr.vmem [resolvable:$true] %s494
      %497 = dma.vmem_to_hbm [thread:$0]  %s495, 128, %s7, [#allocation3]
    $region33: #{mlp_forward.1} parent=1 // pred_fallthru
      _
    // Predicated region
    $region34: #{mlp_forward.1} parent=1 // pred_check
      _
    $region35: #{mlp_forward.1} parent=1 // pred_check_branch
      %499 = sbr.rel (0) target = $region37
    $region36: #{mlp_forward.1} parent=1 // pred_region
      %500 = dma.done [#allocation3], 128
    $region37: #{mlp_forward.1} parent=1 // pred_fallthru
      _
    %501 = vsyncpa [#allocation3], 1

</llo_original>
